<compile_context>
chip_gen: v7x
topology: tpu7x:2x2x1
jax: 0.10.0
libtpu: 0.0.40
codegen_flags: <defaults>
</compile_context>

<pallas_src>
import functools

import jax
import jax.numpy as jnp
from jax.experimental import pallas as pl
from jax.experimental.pallas import tpu as pltpu


# ----------------------------- kernels ------------------------------------ #

def _dbm_train_kernel(m_ref, base_ref, src_ref, out_ref):
    """Training-mode forward (per row tile):
         out = base + m * (source - base)   with m = sigmoid(mask/T) (resident row)
    Inputs stream in their native dtype; blend computed in f32, cast fused into
    the store."""
    m = m_ref[...]                                       # (1, D) f32, broadcast over rows
    b = base_ref[...].astype(jnp.float32)
    s = src_ref[...].astype(jnp.float32)
    out_ref[...] = (b + m * (s - b)).astype(out_ref.dtype)


def _dbm_eval_kernel(base_ref, src_ref, p_ref, out_ref, acc_ref, *, tk, compute_dtype):
    """Eval-mode forward, K-tiled single matmul:
         out = base + (source - base) @ P,   P = W.T @ W  (streamed in (tk, D) chunks)
    base/source rows are resident across the K axis; an f32 accumulator lives in
    VMEM scratch; the base add + output cast happen on the last K step."""
    k = pl.program_id(1)

    @pl.when(k == 0)
    def _init():
        acc_ref[...] = jnp.zeros_like(acc_ref)

    off = pl.multiple_of(k * tk, 128)
    b_k = base_ref[:, pl.ds(off, tk)]
    s_k = src_ref[:, pl.ds(off, tk)]
    diff = s_k.astype(compute_dtype) - b_k.astype(compute_dtype)
    acc_ref[...] += jnp.dot(diff, p_ref[...], preferred_element_type=jnp.float32)

    @pl.when(k == pl.num_programs(1) - 1)
    def _finalize():
        out_ref[...] = (base_ref[...].astype(jnp.float32)
                        + acc_ref[...]).astype(out_ref.dtype)


# ----------------------------- tile planning ------------------------------- #

def _round_up(x, m):
    return ((x + m - 1) // m) * m


def _vmem_capacity_bytes():
    # Generation-aware VMEM capacity (128 MiB on v5e/v6e, 64 MiB on v7x).
    try:
        return int(pltpu.get_tpu_info().vmem_capacity_bytes)
    except Exception:
        return 64 << 20          # conservative (v7x-sized) fallback


def _row_tile_for_cores(M, tm):
    """Shrink tm so the row grid has >=2 steps when M allows (v7x has 2 TCs)."""
    if M <= tm:
        if M >= 16:
            tm = _round_up(pl.cdiv(M, 2), 8)
        else:
            tm = M               # single block == full array dim (always legal)
    return tm


def _plan_train(M, D, in_b, out_b):
    cap = _vmem_capacity_bytes()
    budget = int(cap * 0.70)
    # double-buffered streamed tiles + f32 elementwise temporaries
    per_row = 2 * D * (2 * in_b + out_b) + 2 * D * 4
    resident = 2 * D * 4                                  # (1, D) mask-sigmoid row
    tm = 512
    while tm > 8 and tm * per_row + resident > budget:
        tm //= 2
    tm = _row_tile_for_cores(M, tm)
    vmem_limit = int(min(cap * 0.86, budget + (8 << 20)))
    return tm, vmem_limit


def _plan_eval(M, D, in_b, out_b, p_b):
    cap = _vmem_capacity_bytes()
    budget = int(cap * 0.70)
    # Contraction chunk of P: keep P fully resident when it fits comfortably,
    # otherwise stream multiple-of-128 chunks along the "arbitrary" K axis.
    tk = 128
    for cand in (D, 2048, 1024, 512, 256, 128):
        if cand <= D and D % cand == 0 and 2 * cand * D * p_b <= budget // 3:
            tk = cand
            break
    p_bytes = 2 * tk * D * p_b
    # streamed base/src/out (double-buffered) + f32 acc + f32 dot temp + diff slice
    per_row = 2 * D * (2 * in_b + out_b) + 2 * D * 4 + 2 * D * p_b
    tm = 512
    while tm > 8 and tm * per_row + p_bytes > budget:
        tm //= 2
    tm = _row_tile_for_cores(M, tm)
    vmem_limit = int(min(cap * 0.86, budget + (8 << 20)))
    return tm, tk, vmem_limit


# ----------------------------- jitted forwards ------------------------------ #

@jax.jit
def _dbm_train_forward(mask, temperature, base, source):
    orig_shape, in_dtype = base.shape, base.dtype
    D = orig_shape[-1]
    D_pad = _round_up(D, 128)
    base2d = base.reshape(-1, D)
    src2d = source.reshape(-1, D)
    # Hoisted once per call (not per tile): the resident mask-sigmoid row.
    m_row = jax.nn.sigmoid(mask.astype(jnp.float32) / temperature).reshape(1, D)
    if D_pad != D:
        base2d = jnp.pad(base2d, ((0, 0), (0, D_pad - D)))
        src2d = jnp.pad(src2d, ((0, 0), (0, D_pad - D)))
        m_row = jnp.pad(m_row, ((0, 0), (0, D_pad - D)))
    M = base2d.shape[0]
    in_b = base2d.dtype.itemsize
    out_b = jnp.dtype(in_dtype).itemsize
    tm, vmem_limit = _plan_train(M, D_pad, in_b, out_b)
    grid = (pl.cdiv(M, tm),)
    cost = pl.CostEstimate(
        flops=3 * M * D_pad,
        transcendentals=0,
        bytes_accessed=M * D_pad * (2 * in_b + out_b) + D_pad * 4)

    out2d = pl.pallas_call(
        _dbm_train_kernel,
        out_shape=jax.ShapeDtypeStruct((M, D_pad), in_dtype),
        grid=grid,
        in_specs=[
            pl.BlockSpec((1, D_pad), lambda i: (0, 0)),        # mask-sigmoid (resident)
            pl.BlockSpec((tm, D_pad), lambda i: (i, 0)),       # base tile
            pl.BlockSpec((tm, D_pad), lambda i: (i, 0)),       # source tile
        ],
        out_specs=pl.BlockSpec((tm, D_pad), lambda i: (i, 0)),
        compiler_params=pltpu.CompilerParams(
            dimension_semantics=("parallel",),
            vmem_limit_bytes=vmem_limit),
        cost_estimate=cost,
    )(m_row, base2d, src2d)

    if D_pad != D:
        out2d = out2d[:, :D]
    return out2d.reshape(orig_shape)


@functools.partial(jax.jit, static_argnames=("compute_dtype",))
def _dbm_eval_forward(p, base, source, *, compute_dtype):
    orig_shape, in_dtype = base.shape, base.dtype
    D = orig_shape[-1]
    D_pad = _round_up(D, 128)
    base2d = base.reshape(-1, D)
    src2d = source.reshape(-1, D)
    p = p.astype(compute_dtype)                                # MXU operand dtype
    if D_pad != D:
        base2d = jnp.pad(base2d, ((0, 0), (0, D_pad - D)))
        src2d = jnp.pad(src2d, ((0, 0), (0, D_pad - D)))
        p = jnp.pad(p, ((0, D_pad - D), (0, D_pad - D)))
    M = base2d.shape[0]
    in_b = base2d.dtype.itemsize
    out_b = jnp.dtype(in_dtype).itemsize
    p_b = jnp.dtype(compute_dtype).itemsize
    tm, tk, vmem_limit = _plan_eval(M, D_pad, in_b, out_b, p_b)
    grid = (pl.cdiv(M, tm), D_pad // tk)
    cost = pl.CostEstimate(
        flops=2 * M * D_pad * D_pad + 2 * M * D_pad,
        transcendentals=0,
        bytes_accessed=M * D_pad * (2 * in_b + out_b) + grid[0] * D_pad * D_pad * p_b)

    kernel = functools.partial(_dbm_eval_kernel, tk=tk, compute_dtype=compute_dtype)
    out2d = pl.pallas_call(
        kernel,
        out_shape=jax.ShapeDtypeStruct((M, D_pad), in_dtype),
        grid=grid,
        in_specs=[
            pl.BlockSpec((tm, D_pad), lambda i, k: (i, 0)),    # base rows (resident over K)
            pl.BlockSpec((tm, D_pad), lambda i, k: (i, 0)),    # source rows (resident over K)
            pl.BlockSpec((tk, D_pad), lambda i, k: (k, 0)),    # P chunk (streamed over K)
        ],
        out_specs=pl.BlockSpec((tm, D_pad), lambda i, k: (i, 0)),
        scratch_shapes=[pltpu.VMEM((tm, D_pad), jnp.float32)], # f32 accumulator
        compiler_params=pltpu.CompilerParams(
            dimension_semantics=("parallel", "arbitrary"),
            vmem_limit_bytes=vmem_limit),
        cost_estimate=cost,
    )(base2d, src2d, p)

    if D_pad != D:
        out2d = out2d[:, :D]
    return out2d.reshape(orig_shape)


# ----------------------------- module -------------------------------------- #

class DifferentialBinaryMasking:
    """JAX / Pallas re-implementation of the RAVEL DBM forward pass.

    Parameters (initialized exactly as the PyTorch __init__):
      mask        : zeros([embed_dim]),  float32
      temperature : 0.01,                float32 scalar
      rotate W    : eye(embed_dim),      float32, shape [embed_dim, embed_dim]
    """

    def __init__(self, embed_dim: int):
        self.embed_dim = embed_dim
        self.mask = jnp.zeros((embed_dim,), dtype=jnp.float32)
        self.temperature = jnp.float32(0.01)
        self.rotate_weight = jnp.eye(embed_dim, dtype=jnp.float32)   # (r, D) Linear.weight
        self._p = jnp.eye(embed_dim, dtype=jnp.float32)              # cached P = W.T @ W
        # None = auto: bf16 MXU operands when inputs are bf16, f32 otherwise.
        self.eval_mxu_dtype = None
        # TODO(synk): the training-mode, data-dependent re-creation of rotate_layer
        # (torch.masked_select under no_grad changes the parameter's shape at runtime)
        # has no clean static-shape Pallas equivalent; it does not affect the
        # training-mode output, so it is omitted.

    # -- parameter helpers ----------------------------------------------------
    def set_rotate_weight(self, w):
        w = jnp.asarray(w, jnp.float32)
        self.rotate_weight = w
        self._p = w.T @ w                                   # out = base + diff @ P

    def get_temperature(self):
        return self.temperature

    def set_temperature(self, temp):
        self.temperature = jnp.float32(temp)

    # -- forward ---------------------------------------------------------------
    def __call__(self, base, source, training: bool = False):
        assert base.shape[-1] == self.embed_dim, "last dim must be embed_dim"
        if training:
            return _dbm_train_forward(self.mask, self.temperature, base, source)
        compute_dtype = self.eval_mxu_dtype
        if compute_dtype is None:
            compute_dtype = jnp.bfloat16 if base.dtype == jnp.bfloat16 else jnp.float32
        return _dbm_eval_forward(self._p, base, source, compute_dtype=compute_dtype)

    # -- extras (plain JAX, not hot path) ---------------------------------------
    def get_sparsity_loss(self):
        mask_sigmoid = jax.nn.sigmoid(self.mask / self.temperature)
        return jnp.sum(jnp.abs(mask_sigmoid))


# ----------------------------- reference + demo ----------------------------- #

def _ref_forward(mod: DifferentialBinaryMasking, base, source, training):
    base_f = base.astype(jnp.float32)
    src_f = source.astype(jnp.float32)
    if training:
        m = jax.nn.sigmoid(mod.mask / mod.temperature)
        out = (1.0 - m) * base_f + m * src_f
    else:
        W = mod.rotate_weight
        out = base_f + (src_f @ W.T - base_f @ W.T) @ W
    return out.astype(base.dtype)


if __name__ == "__main__":
    key = jax.random.PRNGKey(0)
    batch, seq, embed_dim = 2, 8, 32
    k1, k2, k3, k4 = jax.random.split(key, 4)
    base = jax.random.normal(k1, (batch, seq, embed_dim), dtype=jnp.float32)
    source = jax.random.normal(k2, (batch, seq, embed_dim), dtype=jnp.float32)

    mod = DifferentialBinaryMasking(embed_dim)
    # non-trivial mask so the training blend is not degenerate
    mod.mask = 0.02 * jax.random.normal(k3, (embed_dim,), dtype=jnp.float32)

    # eval-mode forward (identity rotation, module default)
    out_eval = jax.block_until_ready(mod(base, source, training=False))
    ref_eval = _ref_forward(mod, base, source, training=False)
    assert out_eval.shape == base.shape and out_eval.dtype == base.dtype
    assert jnp.allclose(out_eval, ref_eval, atol=1e-5, rtol=1e-5)

    # eval-mode forward with a non-trivial rotation (checks the fused P = W.T @ W path)
    mod_rot = DifferentialBinaryMasking(embed_dim)
    w = 0.2 * jax.random.normal(k4, (embed_dim, embed_dim), dtype=jnp.float32)
    mod_rot.set_rotate_weight(w)
    out_rot = jax.block_until_ready(mod_rot(base, source, training=False))
    ref_rot = _ref_forward(mod_rot, base, source, training=False)
    assert jnp.allclose(out_rot, ref_rot, atol=1e-4, rtol=1e-4)

    # training-mode forward
    out_train = jax.block_until_ready(mod(base, source, training=True))
    ref_train = _ref_forward(mod, base, source, training=True)
    assert out_train.shape == base.shape and out_train.dtype == base.dtype
    assert jnp.allclose(out_train, ref_train, atol=1e-5, rtol=1e-5)

    # bf16 inputs stay bf16 end-to-end; eval uses bf16 MXU operands automatically
    base_bf = base.astype(jnp.bfloat16)
    src_bf = source.astype(jnp.bfloat16)
    out_bf_t = jax.block_until_ready(mod(base_bf, src_bf, training=True))
    ref_bf_t = _ref_forward(mod, base_bf, src_bf, training=True)
    assert out_bf_t.dtype == jnp.bfloat16
    assert jnp.allclose(out_bf_t.astype(jnp.float32), ref_bf_t.astype(jnp.float32),
                        atol=3e-2, rtol=3e-2)

    out_bf_e = jax.block_until_ready(mod(base_bf, src_bf, training=False))
    ref_bf_e = _ref_forward(mod, base_bf, src_bf, training=False)
    assert out_bf_e.dtype == jnp.bfloat16
    assert jnp.allclose(out_bf_e.astype(jnp.float32), ref_bf_e.astype(jnp.float32),
                        atol=5e-2, rtol=5e-2)

    print("KERNEL_OK")
</pallas_src>

<mosaic_0001>
module attributes {stable_mosaic.version = 11 : i64} {
  func.func @_dbm_eval_kernel(%arg0: i32, %arg1: i32, %arg2: memref<8x128xf32, #tpu.memory_space<vmem>>, %arg3: memref<8x128xf32, #tpu.memory_space<vmem>>, %arg4: memref<128x128xf32, #tpu.memory_space<vmem>>, %arg5: memref<8x128xf32, #tpu.memory_space<vmem>>, %arg6: memref<8x128xf32, #tpu.memory_space<vmem>>) attributes {dimension_semantics = [#tpu.dimension_semantics<parallel>, #tpu.dimension_semantics<arbitrary>], iteration_bounds = array<i64: 2, 1>, scalar_prefetch = 0 : i64, scratch_operands = 1 : i64, tpu.core_type = #tpu.core_type<tc>, window_params = [{transform_indices = @transform_0, window_bounds = array<i64: 8, 128>}, {transform_indices = @transform_1, window_bounds = array<i64: 8, 128>}, {transform_indices = @transform_2, window_bounds = array<i64: 128, 128>}, {transform_indices = @transform_3, window_bounds = array<i64: 8, 128>}]} {
    %c0_i32 = arith.constant 0 : i32
    %0 = arith.cmpi eq, %arg1, %c0_i32 : i32
    %1 = arith.extui %0 : i1 to i32
    %c0_i32_0 = arith.constant 0 : i32
    %2 = arith.cmpi ne, %1, %c0_i32_0 : i32
    scf.if %2 {
      %cst_10 = arith.constant 0.000000e+00 : f32
      %18 = vector.broadcast %cst_10 : f32 to vector<8x128xf32>
      %c0_11 = arith.constant 0 : index
      %c0_12 = arith.constant 0 : index
      %19 = vector.load %arg6[%c0_11, %c0_12] : memref<8x128xf32, #tpu.memory_space<vmem>>, vector<8x128xf32>
      tpu.vector_store %arg6[%c0_11, %c0_12], %18 {strides = array<i32>} : memref<8x128xf32, #tpu.memory_space<vmem>>, vector<8x128xf32>,
    } else {
    }
    %c128_i32 = arith.constant 128 : i32
    %3 = arith.muli %arg1, %c128_i32 : i32
    %4 = tpu.assume_multiple %3, 128 : i32
    %c0 = arith.constant 0 : index
    %5 = arith.index_cast %4 : i32 to index
    %6 = vector.load %arg2[%c0, %5] : memref<8x128xf32, #tpu.memory_space<vmem>>, vector<8x128xf32>
    %c0_1 = arith.constant 0 : index
    %7 = arith.index_cast %4 : i32 to index
    %8 = vector.load %arg3[%c0_1, %7] : memref<8x128xf32, #tpu.memory_space<vmem>>, vector<8x128xf32>
    %9 = arith.subf %8, %6 : vector<8x128xf32>
    %c0_2 = arith.constant 0 : index
    %c0_3 = arith.constant 0 : index
    %10 = vector.load %arg6[%c0_2, %c0_3] : memref<8x128xf32, #tpu.memory_space<vmem>>, vector<8x128xf32>
    %c0_4 = arith.constant 0 : index
    %c0_5 = arith.constant 0 : index
    %11 = vector.load %arg4[%c0_4, %c0_5] : memref<128x128xf32, #tpu.memory_space<vmem>>, vector<128x128xf32>
    %cst = arith.constant dense<0.000000e+00> : vector<8x128xf32>
    %12 = tpu.matmul %9, %11, %cst {dimension_numbers = #tpu.dot_dimension_numbers<[1], [0], [0], [1], [0, 0, 1, 1], [], []>} : vector<8x128xf32>, vector<128x128xf32>, vector<8x128xf32> -> vector<8x128xf32>
    %13 = arith.addf %10, %12 : vector<8x128xf32>
    %c0_6 = arith.constant 0 : index
    %c0_7 = arith.constant 0 : index
    %14 = vector.load %arg6[%c0_6, %c0_7] : memref<8x128xf32, #tpu.memory_space<vmem>>, vector<8x128xf32>
    tpu.vector_store %arg6[%c0_6, %c0_7], %13 {strides = array<i32>} : memref<8x128xf32, #tpu.memory_space<vmem>>, vector<8x128xf32>,
    %c0_i32_8 = arith.constant 0 : i32
    %15 = arith.cmpi eq, %arg1, %c0_i32_8 : i32
    %16 = arith.extui %15 : i1 to i32
    %c0_i32_9 = arith.constant 0 : i32
    %17 = arith.cmpi ne, %16, %c0_i32_9 : i32
    scf.if %17 {
      %c0_10 = arith.constant 0 : index
      %c0_11 = arith.constant 0 : index
      %18 = vector.load %arg2[%c0_10, %c0_11] : memref<8x128xf32, #tpu.memory_space<vmem>>, vector<8x128xf32>
      %c0_12 = arith.constant 0 : index
      %c0_13 = arith.constant 0 : index
      %19 = vector.load %arg6[%c0_12, %c0_13] : memref<8x128xf32, #tpu.memory_space<vmem>>, vector<8x128xf32>
      %20 = arith.addf %18, %19 : vector<8x128xf32>
      %c0_14 = arith.constant 0 : index
      %c0_15 = arith.constant 0 : index
      %21 = vector.load %arg5[%c0_14, %c0_15] : memref<8x128xf32, #tpu.memory_space<vmem>>, vector<8x128xf32>
      tpu.vector_store %arg5[%c0_14, %c0_15], %20 {strides = array<i32>} : memref<8x128xf32, #tpu.memory_space<vmem>>, vector<8x128xf32>,
    } else {
    }
    return
  }
  func.func @transform_0(%arg0: i32, %arg1: i32) -> (i32, i32) {
    %c0_i32 = arith.constant 0 : i32
    %c0_i32_0 = arith.constant 0 : i32
    return %arg0, %c0_i32 : i32, i32
  }
  func.func @transform_1(%arg0: i32, %arg1: i32) -> (i32, i32) {
    %c0_i32 = arith.constant 0 : i32
    %c0_i32_0 = arith.constant 0 : i32
    return %arg0, %c0_i32 : i32, i32
  }
  func.func @transform_2(%arg0: i32, %arg1: i32) -> (i32, i32) {
    %c0_i32 = arith.constant 0 : i32
    %c0_i32_0 = arith.constant 0 : i32
    return %arg1, %c0_i32 : i32, i32
  }
  func.func @transform_3(%arg0: i32, %arg1: i32) -> (i32, i32) {
    %c0_i32 = arith.constant 0 : i32
    %c0_i32_0 = arith.constant 0 : i32
    return %arg0, %c0_i32 : i32, i32
  }
}

</mosaic_0001>

<llo_original>
// kernel: _dbm_eval_forward.1
$region0: #{_dbm_eval_forward.1}
  #allocation0 [shape = 'u32[]', space=smem, size = 0x4, offset = 0x4, fixed_abs, tag = 'smem constant byte address 0x4 - core index']
  #allocation1 [shape = 'u32[144,128]{1,0:T(1,128)}', space=vmem, size = 0x12000, scoped, tag = 'internal scratch']
  #allocation2 [shape = 'f32[8,128]{1,0:T(8,128)}', space=vmem, size = 0x1000, scoped, tag = 'scratch operand']
  %s0 = inlined_call_operand.vmem [shape: f32[16,128], index: 0, kind: input, shape index: {}]
  %s1 = inlined_call_operand.vmem [shape: f32[16,128], index: 1, kind: input, shape index: {}]
  %s2 = inlined_call_operand.vmem [shape: f32[128,128], index: 2, kind: input, shape index: {}]
  %s3 = inlined_call_operand.vmem [shape: f32[16,128], index: 3, kind: output, shape index: {}]
  %s4 = sld [smem:[#allocation0]]
  $region53: #{_dbm_eval_forward.1} parent=0
    _
  %s6 = ssub.s32 1, %s4
  %s7 = scalar_select 0, %s6, %s4
  loop: start=0, step=1, limit=4
  $region2: #{_dbm_eval_forward.1} parent=0 // loop_pre_header
    _
  $region3: #{_dbm_eval_forward.1} parent=0 // loop_header
    %s9 = sphi 0, %s13
    %p10 = scmp.ge.s32.totalorder %s9, 4
    %s16 = sphi 0, %s28
    %s17 = sphi 0, %s24
    %s18 = sphi 0, %s16
    %s19 = sphi 0, %s17
    %s20 = sphi 0, %s18
    %s21 = sphi 0, %s19
    %s31 = sphi 0, %s33
    %s34 = sphi 0, %s31
    %s35 = sphi 0, %s34
    %s51 = sphi 0, %s35
    %s57 = sphi 0, %s59
    %s60 = sphi 0, %s57
    %s61 = sphi 0, %s60
    %s77 = sphi 0, %s61
    %s83 = sphi 0, %s85
    %s86 = sphi 0, %s83
    %s87 = sphi 0, %s86
    %s103 = sphi 0, %s87
    %s109 = sphi 0, %s111
    %s112 = sphi 0, %s109
    %s113 = sphi 0, %s112
    %s129 = sphi 0, %s113
  $region4: #{_dbm_eval_forward.1} parent=0 // loop_header_branch
    %12 = sbr.rel (%p10) target = $region8
  $region5: #{_dbm_eval_forward.1} parent=0 // loop_body
    %s14 = ssub.s32 %s9, 1
    %s15 = ssub.s32 %s9, 2
    %s22 = sadd.s32 1, %s17
    %p23 = scmp.ge.s32.totalorder %s22, 1
    %s24 = scalar_select %p23, 0, %s22
    %s25 = sadd.s32 1, %s16
    %s26 = scalar_select %p23, %s25, %s16
    %p27 = scmp.ge.s32.totalorder %s26, 2
    %s28 = scalar_select %p27, 0, %s26
    %s29 = ssub.s32 %s16, %s28
    %p30 = scmp.eq.s32.totalorder %s29, 0
    %s32 = sadd.s32 %s31, 1
    %s33 = scalar_select %p30, %s31, %s32
    %p36 = pneg %p30
    %p37 = scmp.eq.s32.totalorder %s9, 1
    %p38 = por %p36, %p37
    %p39 = scmp.ne.s32.totalorder %s31, %s34
    %p40 = scmp.eq.s32.totalorder %s9, 0
    %p41 = por %p39, %p40
    %p42 = scmp.ne.s32.totalorder %s31, %s34
    %p43 = scmp.eq.s32.totalorder %s14, 1
    %p44 = por %p42, %p43
    %p45 = scmp.ne.s32.totalorder %s34, %s35
    %p46 = scmp.eq.s32.totalorder %s14, 0
    %p47 = por %p45, %p46
    %p48 = scmp.ne.s32.totalorder %s34, %s35
    %p49 = scmp.eq.s32.totalorder %s15, 1
    %p50 = por %p48, %p49
    %p52 = scmp.ne.s32.totalorder %s35, %s51
    %p53 = scmp.eq.s32.totalorder %s15, 0
    %p54 = por %p52, %p53
    %s55 = ssub.s32 %s16, %s28
    %p56 = scmp.eq.s32.totalorder %s55, 0
    %s58 = sadd.s32 %s57, 1
    %s59 = scalar_select %p56, %s57, %s58
    %p62 = pneg %p56
    %p63 = scmp.eq.s32.totalorder %s9, 1
    %p64 = por %p62, %p63
    %p65 = scmp.ne.s32.totalorder %s57, %s60
    %p66 = scmp.eq.s32.totalorder %s9, 0
    %p67 = por %p65, %p66
    %p68 = scmp.ne.s32.totalorder %s57, %s60
    %p69 = scmp.eq.s32.totalorder %s14, 1
    %p70 = por %p68, %p69
    %p71 = scmp.ne.s32.totalorder %s60, %s61
    %p72 = scmp.eq.s32.totalorder %s14, 0
    %p73 = por %p71, %p72
    %p74 = scmp.ne.s32.totalorder %s60, %s61
    %p75 = scmp.eq.s32.totalorder %s15, 1
    %p76 = por %p74, %p75
    %p78 = scmp.ne.s32.totalorder %s61, %s77
    %p79 = scmp.eq.s32.totalorder %s15, 0
    %p80 = por %p78, %p79
    %s81 = ssub.s32 %s17, %s24
    %p82 = scmp.eq.s32.totalorder %s81, 0
    %s84 = sadd.s32 %s83, 1
    %s85 = scalar_select %p82, %s83, %s84
    %p88 = pneg %p82
    %p89 = scmp.eq.s32.totalorder %s9, 1
    %p90 = por %p88, %p89
    %p91 = scmp.ne.s32.totalorder %s83, %s86
    %p92 = scmp.eq.s32.totalorder %s9, 0
    %p93 = por %p91, %p92
    %p94 = scmp.ne.s32.totalorder %s83, %s86
    %p95 = scmp.eq.s32.totalorder %s14, 1
    %p96 = por %p94, %p95
    %p97 = scmp.ne.s32.totalorder %s86, %s87
    %p98 = scmp.eq.s32.totalorder %s14, 0
    %p99 = por %p97, %p98
    %p100 = scmp.ne.s32.totalorder %s86, %s87
    %p101 = scmp.eq.s32.totalorder %s15, 1
    %p102 = por %p100, %p101
    %p104 = scmp.ne.s32.totalorder %s87, %s103
    %p105 = scmp.eq.s32.totalorder %s15, 0
    %p106 = por %p104, %p105
    %s107 = ssub.s32 %s16, %s28
    %p108 = scmp.eq.s32.totalorder %s107, 0
    %s110 = sadd.s32 %s109, 1
    %s111 = scalar_select %p108, %s109, %s110
    %p114 = pneg %p108
    %p115 = scmp.eq.s32.totalorder %s9, 1
    %p116 = por %p114, %p115
    %p117 = scmp.ne.s32.totalorder %s109, %s112
    %p118 = scmp.eq.s32.totalorder %s9, 0
    %p119 = por %p117, %p118
    %p120 = scmp.ne.s32.totalorder %s109, %s112
    %p121 = scmp.eq.s32.totalorder %s14, 1
    %p122 = por %p120, %p121
    %p123 = scmp.ne.s32.totalorder %s112, %s113
    %p124 = scmp.eq.s32.totalorder %s14, 0
    %p125 = por %p123, %p124
    %p126 = scmp.ne.s32.totalorder %s112, %s113
    %p127 = scmp.eq.s32.totalorder %s15, 1
    %p128 = por %p126, %p127
    %p130 = scmp.ne.s32.totalorder %s113, %s129
    %p131 = scmp.eq.s32.totalorder %s15, 0
    %p132 = por %p130, %p131
    %p133 = scmp.le.s32.totalorder 1, %s9
    %p134 = scmp.lt.s32.totalorder %s9, 3
    %p135 = pnand %p133, %p134
    %p136 = pneg %p135
    // Predicated region
    $region9: #{_dbm_eval_forward.1} parent=5 // pred_check
      _
    $region10: #{_dbm_eval_forward.1} parent=5 // pred_check_branch
      %138 = sbr.rel (%p135) target = $region12
    $region11: #{_dbm_eval_forward.1} parent=5 // pred_region
      %s139 = ssub.s32 %s9, 1
      // Predicated region
      $region13: #{_dbm_eval_forward.1} parent=11 // pred_check
        %p140 = pneg %p99
      $region14: #{_dbm_eval_forward.1} parent=11 // pred_check_branch
        %142 = sbr.rel (%p140) target = $region16
      $region15: #{_dbm_eval_forward.1} parent=11 // pred_region
        %s143 = smul.u32 16, %s19
        %p144 = scmp.lt.s32.totalorder %s143, 15
        %s145 = scalar_select %p144, %s143, 15
        %s146 = smul.addr %s145, 8
        %s147 = scalar_lea.vmem %s2, %s146
        %s148 = smul.u32 16, %s19
      $region16: #{_dbm_eval_forward.1} parent=11 // pred_fallthru
        _
    $region12: #{_dbm_eval_forward.1} parent=5 // pred_fallthru
      _
    %p149 = scmp.lt.s32.totalorder %s9, 2
    // Predicated region
    $region17: #{_dbm_eval_forward.1} parent=5 // pred_check
      %p150 = pneg %p149
    $region18: #{_dbm_eval_forward.1} parent=5 // pred_check_branch
      %152 = sbr.rel (%p150) target = $region20
    $region19: #{_dbm_eval_forward.1} parent=5 // pred_region
      // Predicated region
      $region21: #{_dbm_eval_forward.1} parent=19 // pred_check
        %p153 = pneg %p41
      $region22: #{_dbm_eval_forward.1} parent=19 // pred_check_branch
        %155 = sbr.rel (%p153) target = $region24
      $region23: #{_dbm_eval_forward.1} parent=19 // pred_region
        %p156 = scmp.lt.s32.totalorder %s16, 1
        %s157 = scalar_select %p156, %s16, 1
        %s158 = smul.addr %s157, 8
        %s159 = scalar_lea.vmem %s0, %s158
      $region24: #{_dbm_eval_forward.1} parent=19 // pred_fallthru
        _
      // Predicated region
      $region25: #{_dbm_eval_forward.1} parent=19 // pred_check
        %p160 = pneg %p67
      $region26: #{_dbm_eval_forward.1} parent=19 // pred_check_branch
        %162 = sbr.rel (%p160) target = $region28
      $region27: #{_dbm_eval_forward.1} parent=19 // pred_region
        %p163 = scmp.lt.s32.totalorder %s16, 1
        %s164 = scalar_select %p163, %s16, 1
        %s165 = smul.addr %s164, 8
        %s166 = scalar_lea.vmem %s1, %s165
      $region28: #{_dbm_eval_forward.1} parent=19 // pred_fallthru
        _
    $region20: #{_dbm_eval_forward.1} parent=5 // pred_fallthru
      _
    %p167 = scmp.le.s32.totalorder 1, %s9
    %p168 = scmp.lt.s32.totalorder %s9, 3
    %p169 = pnand %p167, %p168
    %p170 = pneg %p169
    // Predicated region
    $region29: #{_dbm_eval_forward.1} parent=5 // pred_check
      _
    $region30: #{_dbm_eval_forward.1} parent=5 // pred_check_branch
      %172 = sbr.rel (%p169) target = $region32
    $region31: #{_dbm_eval_forward.1} parent=5 // pred_region
      %s173 = ssub.s32 %s9, 1
      %p174 = scmp.lt.s32.totalorder %s18, 1
      %s175 = scalar_select %p174, %s18, 1
      %s176 = smul.addr %s175, 8
      %s177 = scalar_lea.vmem %s0, %s176
      %p178 = pneg %p47
      %p179 = pneg %p44
      %p180 = scmp.lt.s32.totalorder %s18, 1
      %s181 = scalar_select %p180, %s18, 1
      %s182 = smul.addr %s181, 8
      %s183 = scalar_lea.vmem %s1, %s182
      %p184 = pneg %p73
      %p185 = pneg %p70
      %s186 = smul.u32 16, %s19
      %p187 = scmp.lt.s32.totalorder %s186, 15
      %s188 = scalar_select %p187, %s186, 15
      %s189 = smul.addr %s188, 8
      %s190 = scalar_lea.vmem %s2, %s189
      %p191 = pneg %p99
      %p192 = pneg %p96
      %p193 = pneg %p125
      %p194 = pneg %p122
      %p195 = scmp.lt.s32.totalorder %s18, 1
      %s196 = scalar_select %p195, %s18, 1
      %s197 = smul.addr %s196, 8
      %s198 = scalar_lea.vmem %s3, %s197
      %p199 = scmp.lt.s32.totalorder %s18, 1
      %s200 = scalar_select %p199, %s18, 1
      %s201 = smul.addr %s200, 8
      %s202 = scalar_lea.vmem %s0, %s201
      %p203 = scmp.lt.s32.totalorder %s18, 1
      %s204 = scalar_select %p203, %s18, 1
      %s205 = smul.addr %s204, 8
      %s206 = scalar_lea.vmem %s1, %s205
      %s207 = smul.u32 16, %s19
      %p208 = scmp.lt.s32.totalorder %s207, 15
      %s209 = scalar_select %p208, %s207, 15
      %s210 = smul.addr %s209, 8
      %s211 = scalar_lea.vmem %s2, %s210
      %s212 = smul.u32 16, %s19
      %p213 = scmp.lt.s32.totalorder %s18, 1
      %s214 = scalar_select %p213, %s18, 1
      %s215 = smul.addr %s214, 8
      %s216 = scalar_lea.vmem %s3, %s215
      %p217 = scmp.eq.s32.totalorder %s19, 0
      // Predicated region
      $region33: #{_dbm_eval_forward.1} parent=31 // pred_check
        %p218 = pneg %p217
      $region34: #{_dbm_eval_forward.1} parent=31 // pred_check_branch
        %220 = sbr.rel (%p218) target = $region36
      $region35: #{_dbm_eval_forward.1} parent=31 // pred_region
        %221 = vst [vmem:[#allocation2] sm:$0xff] 0.0
      $region36: #{_dbm_eval_forward.1} parent=31 // pred_fallthru
        _
      %s222 = smul.u32 %s19, 128
      %s223 = sshra.s32 %s222, 7
      %s224 = sand.u32 %s222, 127
      %s225 = scalar_lea.vmem %s202, %s223
      %v226 = vld [vmem:[%s225] sm:$0xff]
      %s227 = scalar_lea.vmem %s206, %s223
      %v228 = vld [vmem:[%s227] sm:$0xff]
      %v229 = vsub.f32 %v228, %v226
      %v230 = vld [vmem:[#allocation2] sm:$0xff]
      %v231 = vld [vmem:[%s211] sm:$0xff]
      %v232 = vld [vmem:[%s211 + $0x8] sm:$0xff]
      %v233 = vld [vmem:[%s211 + $0x10] sm:$0xff]
      %v234 = vld [vmem:[%s211 + $0x18] sm:$0xff]
      %v235 = vld [vmem:[%s211 + $0x20] sm:$0xff]
      %v236 = vld [vmem:[%s211 + $0x28] sm:$0xff]
      %v237 = vld [vmem:[%s211 + $0x30] sm:$0xff]
      %v238 = vld [vmem:[%s211 + $0x38] sm:$0xff]
      %v239 = vld [vmem:[%s211 + $0x40] sm:$0xff]
      %v240 = vld [vmem:[%s211 + $0x48] sm:$0xff]
      %v241 = vld [vmem:[%s211 + $0x50] sm:$0xff]
      %v242 = vld [vmem:[%s211 + $0x58] sm:$0xff]
      %v243 = vld [vmem:[%s211 + $0x60] sm:$0xff]
      %v244 = vld [vmem:[%s211 + $0x68] sm:$0xff]
      %v245 = vld [vmem:[%s211 + $0x70] sm:$0xff]
      %v246 = vld [vmem:[%s211 + $0x78] sm:$0xff]
      %247 = vmatprep.subr.mxu0 0.0
      %248 = vmatpush1.msra.mxu0 %v231
      %249 = vmatprep.subr.mxu0 0.0
      %250 = vmatpush1.msra.mxu0 %v232
      %251 = vmatprep.subr.mxu0 0.0
      %252 = vmatpush1.msra.mxu0 %v233
      %253 = vmatprep.subr.mxu0 0.0
      %254 = vmatpush1.msra.mxu0 %v234
      %255 = vmatprep.subr.mxu0 0.0
      %256 = vmatpush1.msra.mxu0 %v235
      %257 = vmatprep.subr.mxu0 0.0
      %258 = vmatpush1.msra.mxu0 %v236
      %259 = vmatprep.subr.mxu0 0.0
      %260 = vmatpush1.msra.mxu0 %v237
      %261 = vmatprep.subr.mxu0 0.0
      %262 = vmatpush1.msra.mxu0 %v238
      %263 = vmatprep.subr.mxu0 0.0
      %264 = vmatpush1.msra.mxu0 %v239
      %265 = vmatprep.subr.mxu0 0.0
      %266 = vmatpush1.msra.mxu0 %v240
      %267 = vmatprep.subr.mxu0 0.0
      %268 = vmatpush1.msra.mxu0 %v241
      %269 = vmatprep.subr.mxu0 0.0
      %270 = vmatpush1.msra.mxu0 %v242
      %271 = vmatprep.subr.mxu0 0.0
      %272 = vmatpush1.msra.mxu0 %v243
      %273 = vmatprep.subr.mxu0 0.0
      %274 = vmatpush1.msra.mxu0 %v244
      %275 = vmatprep.subr.mxu0 0.0
      %276 = vmatpush1.msra.mxu0 %v245
      %277 = vmatprep.subr.mxu0 0.0
      %278 = vmatpush1.msra.mxu0 %v246
      %279 = vmatprep.subr.mxu0 0.0
      %280 = vmatpush1.msra.mxu0 0.0
      %281 = vmatprep.subr.mxu0 0.0
      %282 = vmatpush1.msra.mxu0 0.0
      %283 = vmatprep.subr.mxu0 0.0
      %284 = vmatpush1.msra.mxu0 0.0
      %285 = vmatprep.subr.mxu0 0.0
      %286 = vmatpush1.msra.mxu0 0.0
      %287 = vmatprep.subr.mxu0 0.0
      %288 = vmatpush1.msra.mxu0 0.0
      %289 = vmatprep.subr.mxu0 0.0
      %290 = vmatpush1.msra.mxu0 0.0
      %291 = vmatprep.subr.mxu0 0.0
      %292 = vmatpush1.msra.mxu0 0.0
      %293 = vmatprep.subr.mxu0 0.0
      %294 = vmatpush1.msra.mxu0 0.0
      %295 = vmatprep.subr.mxu0 0.0
      %296 = vmatpush1.msra.mxu0 0.0
      %297 = vmatprep.subr.mxu0 0.0
      %298 = vmatpush1.msra.mxu0 0.0
      %299 = vmatprep.subr.mxu0 0.0
      %300 = vmatpush1.msra.mxu0 0.0
      %301 = vmatprep.subr.mxu0 0.0
      %302 = vmatpush1.msra.mxu0 0.0
      %303 = vmatprep.subr.mxu0 0.0
      %304 = vmatpush1.msra.mxu0 0.0
      %305 = vmatprep.subr.mxu0 0.0
      %306 = vmatpush1.msra.mxu0 0.0
      %307 = vmatprep.subr.mxu0 0.0
      %308 = vmatpush1.msra.mxu0 0.0
      %309 = vmatprep.subr.mxu0 0.0
      %310 = vmatpush1.msra.mxu0 0.0
      %311 = vmatprep.mubr.f32.mxu0 0.0
      %312 = vmatmul.mubr.f32.gmra.mrb[0].mxu0 %v229
      %v313 = vpop.f32.mrb[0].mxu0
      %v314 = vadd.f32 0.0, %v313
      %v315 = vpop.f32.mrb[0].mxu0
      %316 = vdwg.mxu0
      %v317 = vadd.f32 %v230, %v314
      %318 = vst [vmem:[#allocation2] sm:$0xff] %v317
      // Predicated region
      $region37: #{_dbm_eval_forward.1} parent=31 // pred_check
        %p319 = pneg %p217
      $region38: #{_dbm_eval_forward.1} parent=31 // pred_check_branch
        %321 = sbr.rel (%p319) target = $region40
      $region39: #{_dbm_eval_forward.1} parent=31 // pred_region
        %v322 = vld [vmem:[%s202] sm:$0xff]
        %v323 = vld [vmem:[#allocation2] sm:$0xff]
        %v324 = vadd.f32 %v322, %v323
        %325 = vst [vmem:[%s216] sm:$0xff] %v324
      $region40: #{_dbm_eval_forward.1} parent=31 // pred_fallthru
        _
      %p326 = scmp.lt.s32.totalorder %s18, 1
      %s327 = scalar_select %p326, %s18, 1
      %s328 = smul.addr %s327, 8
      %s329 = scalar_lea.vmem %s3, %s328
      // Predicated region
      $region41: #{_dbm_eval_forward.1} parent=31 // pred_check
        %p330 = pneg %p122
      $region42: #{_dbm_eval_forward.1} parent=31 // pred_check_branch
        %332 = sbr.rel (%p330) target = $region44
      $region43: #{_dbm_eval_forward.1} parent=31 // pred_region
        _
      $region44: #{_dbm_eval_forward.1} parent=31 // pred_fallthru
        _
    $region32: #{_dbm_eval_forward.1} parent=5 // pred_fallthru
      _
    %p333 = scmp.le.s32.totalorder 2, %s9
    // Predicated region
    $region45: #{_dbm_eval_forward.1} parent=5 // pred_check
      %p334 = pneg %p333
    $region46: #{_dbm_eval_forward.1} parent=5 // pred_check_branch
      %336 = sbr.rel (%p334) target = $region48
    $region47: #{_dbm_eval_forward.1} parent=5 // pred_region
      %s337 = ssub.s32 %s9, 2
      // Predicated region
      $region49: #{_dbm_eval_forward.1} parent=47 // pred_check
        %p338 = pneg %p128
      $region50: #{_dbm_eval_forward.1} parent=47 // pred_check_branch
        %340 = sbr.rel (%p338) target = $region52
      $region51: #{_dbm_eval_forward.1} parent=47 // pred_region
        %p341 = scmp.lt.s32.totalorder %s20, 1
        %s342 = scalar_select %p341, %s20, 1
        %s343 = smul.addr %s342, 8
        %s344 = scalar_lea.vmem %s3, %s343
      $region52: #{_dbm_eval_forward.1} parent=47 // pred_fallthru
        _
    $region48: #{_dbm_eval_forward.1} parent=5 // pred_fallthru
      _
  $region6: #{_dbm_eval_forward.1} parent=0 // loop_footer
    %s13 = sadd.s32 1, %s9
  $region7: #{_dbm_eval_forward.1} parent=0 // loop_footer_branch
    %8 = sbr.rel target = $region3
  $region8: #{_dbm_eval_forward.1} parent=0 // loop_exit
    _

</llo_original>
